<compile_context>
chip_gen: v6e
topology: v6e:2x2x1
jax: 0.10.0
libtpu: 0.0.40
codegen_flags: <defaults>
</compile_context>

<pallas_src>
from functools import partial

import jax
import jax.numpy as jnp
from jax.experimental import pallas as pl
from jax.experimental.pallas import tpu as pltpu


VMEM_LIMIT = 48 * 1024 * 1024  # fits v7x (64 MiB physical), fine on v5e/v6e


# ---------------------------------------------------------------------------
# Kernel 1: per-head fused QKV projection.
# grid = (B, q-tiles, H); heads on the grid -> q/k/v land directly in
# (B, H, T, hs) layout, no in-kernel head transposes.  The x block index is
# constant across the innermost H axis, so x is DMA'd once per (b, q-tile).
# ---------------------------------------------------------------------------
def qkv_proj_kernel(x_ref, wq_ref, wk_ref, wv_ref, q_ref, k_ref, v_ref):
    x = x_ref[0]                                       # (tq, C) bf16
    q_ref[0, 0] = jnp.dot(x, wq_ref[0],
                          preferred_element_type=jnp.float32).astype(q_ref.dtype)
    k_ref[0, 0] = jnp.dot(x, wk_ref[0],
                          preferred_element_type=jnp.float32).astype(k_ref.dtype)
    v_ref[0, 0] = jnp.dot(x, wv_ref[0],
                          preferred_element_type=jnp.float32).astype(v_ref.dtype)


# ---------------------------------------------------------------------------
# Kernel 2: causal flash attention with online softmax.
# grid = (B, H, q-tiles, kv-tiles), kv innermost + "arbitrary".
# ---------------------------------------------------------------------------
def flash_attn_kernel(q_ref, k_ref, v_ref, o_ref, m_ref, l_ref, acc_ref,
                      *, tq, tkv):
    qi = pl.program_id(2)
    ki = pl.program_id(3)
    nkv = pl.num_programs(3)

    @pl.when(ki == 0)
    def _():
        m_ref[...] = jnp.full_like(m_ref, -jnp.inf)
        l_ref[...] = jnp.zeros_like(l_ref)
        acc_ref[...] = jnp.zeros_like(acc_ref)

    q_start = qi * tq
    kv_start = ki * tkv

    # Causal block skipping: only compute blocks that are not entirely above
    # the diagonal (the DMA for skipped blocks is still issued by the
    # pipeline, but all MXU/VPU work is elided).
    @pl.when(kv_start <= q_start + tq - 1)
    def _():
        q = q_ref[0, 0]                                # (tq, hs)  bf16
        k = k_ref[0, 0]                                # (tkv, hs) bf16
        v = v_ref[0, 0]                                # (tkv, hs) bf16

        # q @ k^T, f32 accumulation (contraction on hs for both operands).
        s = jax.lax.dot_general(q, k, (((1,), (1,)), ((), ())),
                                preferred_element_type=jnp.float32)  # (tq,tkv)

        # In-kernel causal mask for this block (no (T,T) mask from HBM).
        rows = q_start + jax.lax.broadcasted_iota(jnp.int32, (tq, tkv), 0)
        cols = kv_start + jax.lax.broadcasted_iota(jnp.int32, (tq, tkv), 1)
        s = jnp.where(cols <= rows, s, jnp.float32(-1e30))

        m_prev = m_ref[...]
        m_new = jnp.maximum(m_prev, jnp.max(s, axis=-1, keepdims=True))
        alpha = jnp.exp(m_prev - m_new)
        p = jnp.exp(s - m_new)

        l_ref[...] = alpha * l_ref[...] + jnp.sum(p, axis=-1, keepdims=True)
        acc_ref[...] = alpha * acc_ref[...] + jnp.dot(
            p.astype(v.dtype), v, preferred_element_type=jnp.float32)
        m_ref[...] = m_new

    @pl.when(ki == nkv - 1)
    def _():
        # Normalize after the PV matmul: O(tq*hs) multiply instead of
        # O(tq*tkv); reciprocal goes to the EUP slot.
        inv_l = pl.reciprocal(l_ref[...], approx=True)
        o_ref[0, 0] = (acc_ref[...] * inv_l).astype(o_ref.dtype)


# ---------------------------------------------------------------------------
# Kernel 3: output projection as a reduction over the head grid axis
# (accumulator resident in VMEM scratch), plus bias.  No head-merge transpose.
# grid = (B, q-tiles, H), H innermost + "arbitrary".
# ---------------------------------------------------------------------------
def out_proj_kernel(att_ref, wp_ref, bp_ref, o_ref, acc_ref):
    h = pl.program_id(2)

    @pl.when(h == 0)
    def _():
        acc_ref[...] = jnp.broadcast_to(bp_ref[...], acc_ref.shape).astype(
            jnp.float32)

    acc_ref[...] += jnp.dot(att_ref[0, 0], wp_ref[0],
                            preferred_element_type=jnp.float32)

    @pl.when(h == pl.num_programs(2) - 1)
    def _():
        o_ref[0] = acc_ref[...].astype(o_ref.dtype)


# ---------------------------------------------------------------------------
# Wrapper
# ---------------------------------------------------------------------------
def multi_head_attention(x, wq, wk, wv, wp, bp, n_head, *, tq=None, tkv=None):
    B, T, C = x.shape
    H = n_head
    assert C % H == 0
    hs = C // H

    if tq is None:
        tq = min(T, 128)
    if tkv is None:
        tkv = min(T, 128)
    assert T % tq == 0 and T % tkv == 0
    nq, nkv = T // tq, T // tkv

    bf16 = jnp.bfloat16

    # One-time wrapper-side prep (layout plumbing, not per-token compute):
    #  * fold the reference's C**-0.5 (n_embd, matching the PyTorch module —
    #    intentionally NOT head_size**-0.5) into Wq,
    #  * cast weights and activations to bf16 (halves HBM->VMEM bytes),
    #  * stack per-head weight slices on a leading H axis so heads become a
    #    grid axis (no in-kernel head split/merge, no unaligned column slices).
    scale = C ** -0.5
    wq_h = (wq * scale).reshape(C, H, hs).transpose(1, 0, 2).astype(bf16)  # (H,C,hs)
    wk_h = wk.reshape(C, H, hs).transpose(1, 0, 2).astype(bf16)            # (H,C,hs)
    wv_h = wv.reshape(C, H, hs).transpose(1, 0, 2).astype(bf16)            # (H,C,hs)
    wp_h = wp.reshape(H, hs, C).astype(bf16)                               # (H,hs,C)
    bp_f = bp.reshape(1, C).astype(jnp.float32)
    xb = x.astype(bf16)

    # ---- Kernel 1: QKV projection --------------------------------------
    q, k, v = pl.pallas_call(
        qkv_proj_kernel,
        out_shape=(jax.ShapeDtypeStruct((B, H, T, hs), bf16),) * 3,
        grid_spec=pltpu.PrefetchScalarGridSpec(
            num_scalar_prefetch=0,
            grid=(B, nq, H),
            in_specs=[
                pl.BlockSpec((1, tq, C), lambda b, qi, h: (b, qi, 0)),
                pl.BlockSpec((1, C, hs), lambda b, qi, h: (h, 0, 0)),
                pl.BlockSpec((1, C, hs), lambda b, qi, h: (h, 0, 0)),
                pl.BlockSpec((1, C, hs), lambda b, qi, h: (h, 0, 0)),
            ],
            out_specs=[
                pl.BlockSpec((1, 1, tq, hs), lambda b, qi, h: (b, h, qi, 0)),
                pl.BlockSpec((1, 1, tq, hs), lambda b, qi, h: (b, h, qi, 0)),
                pl.BlockSpec((1, 1, tq, hs), lambda b, qi, h: (b, h, qi, 0)),
            ],
        ),
        compiler_params=pltpu.CompilerParams(
            dimension_semantics=("parallel", "parallel", "arbitrary"),
            vmem_limit_bytes=VMEM_LIMIT),
    )(xb, wq_h, wk_h, wv_h)

    # ---- Kernel 2: causal flash attention -------------------------------
    att = pl.pallas_call(
        partial(flash_attn_kernel, tq=tq, tkv=tkv),
        out_shape=jax.ShapeDtypeStruct((B, H, T, hs), bf16),
        grid_spec=pltpu.PrefetchScalarGridSpec(
            num_scalar_prefetch=0,
            grid=(B, H, nq, nkv),
            in_specs=[
                pl.BlockSpec((1, 1, tq, hs), lambda b, h, qi, ki: (b, h, qi, 0)),
                pl.BlockSpec((1, 1, tkv, hs), lambda b, h, qi, ki: (b, h, ki, 0)),
                pl.BlockSpec((1, 1, tkv, hs), lambda b, h, qi, ki: (b, h, ki, 0)),
            ],
            out_specs=pl.BlockSpec((1, 1, tq, hs),
                                   lambda b, h, qi, ki: (b, h, qi, 0)),
            scratch_shapes=[
                pltpu.VMEM((tq, 1), jnp.float32),    # running max m
                pltpu.VMEM((tq, 1), jnp.float32),    # running sum l
                pltpu.VMEM((tq, hs), jnp.float32),   # un-normalized acc
            ],
        ),
        compiler_params=pltpu.CompilerParams(
            dimension_semantics=("parallel", "parallel", "parallel",
                                 "arbitrary"),
            vmem_limit_bytes=VMEM_LIMIT),
    )(q, k, v)

    # ---- Kernel 3: output projection (+bias), reducing over heads -------
    out = pl.pallas_call(
        out_proj_kernel,
        out_shape=jax.ShapeDtypeStruct((B, T, C), x.dtype),
        grid_spec=pltpu.PrefetchScalarGridSpec(
            num_scalar_prefetch=0,
            grid=(B, nq, H),
            in_specs=[
                pl.BlockSpec((1, 1, tq, hs), lambda b, qi, h: (b, h, qi, 0)),
                pl.BlockSpec((1, hs, C), lambda b, qi, h: (h, 0, 0)),
                pl.BlockSpec((1, C), lambda b, qi, h: (0, 0)),
            ],
            out_specs=pl.BlockSpec((1, tq, C), lambda b, qi, h: (b, qi, 0)),
            scratch_shapes=[pltpu.VMEM((tq, C), jnp.float32)],
        ),
        compiler_params=pltpu.CompilerParams(
            dimension_semantics=("parallel", "parallel", "arbitrary"),
            vmem_limit_bytes=VMEM_LIMIT),
    )(att, wp_h, bp_f)
    return out


# ---------------------------------------------------------------------------
# Pure-JAX reference (matches the PyTorch module exactly, f32).
# ---------------------------------------------------------------------------
def reference_mha(x, wq, wk, wv, wp, bp, n_head):
    B, T, C = x.shape
    hs = C // n_head
    q = x @ wq
    k = x @ wk
    v = x @ wv
    qh = q.reshape(B, T, n_head, hs).transpose(0, 2, 1, 3)
    kh = k.reshape(B, T, n_head, hs).transpose(0, 2, 1, 3)
    vh = v.reshape(B, T, n_head, hs).transpose(0, 2, 1, 3)
    wei = jnp.einsum('bhtd,bhsd->bhts', qh, kh) * C ** -0.5
    tril = jnp.tril(jnp.ones((T, T), dtype=bool))
    wei = jnp.where(tril[None, None], wei, -jnp.inf)
    p = jax.nn.softmax(wei, axis=-1)
    att = jnp.einsum('bhts,bhsd->bhtd', p, vh)
    att = att.transpose(0, 2, 1, 3).reshape(B, T, C)
    return att @ wp + bp.reshape(1, C)


def make_params(key, n_embd):
    ks = jax.random.split(key, 5)
    s = 0.02
    wq = s * jax.random.normal(ks[0], (n_embd, n_embd), jnp.float32)
    wk = s * jax.random.normal(ks[1], (n_embd, n_embd), jnp.float32)
    wv = s * jax.random.normal(ks[2], (n_embd, n_embd), jnp.float32)
    wp = s * jax.random.normal(ks[3], (n_embd, n_embd), jnp.float32)
    bp = s * jax.random.normal(ks[4], (n_embd,), jnp.float32)
    return wq, wk, wv, wp, bp


if __name__ == "__main__":
    # Small shapes consistent with the module (n_embd divisible by n_head),
    # chosen so the embedding dim is lane-dense (128) and the flash grid has
    # more than one q/kv tile so the online-softmax + block-skip path runs.
    B, T, n_embd, n_head = 2, 64, 128, 4

    key = jax.random.PRNGKey(0)
    kx, kp = jax.random.split(key)
    x = jax.random.normal(kx, (B, T, n_embd), jnp.float32)
    wq, wk, wv, wp, bp = make_params(kp, n_embd)

    out = multi_head_attention(x, wq, wk, wv, wp, bp, n_head, tq=32, tkv=32)
    out = jax.block_until_ready(out)

    ref = reference_mha(x, wq, wk, wv, wp, bp, n_head)
    assert out.shape == (B, T, n_embd)
    # bf16 matmul inputs / intermediates + approx reciprocal vs f32 reference.
    max_err = float(jnp.max(jnp.abs(out - ref)))
    assert jnp.allclose(out, ref, atol=2e-2, rtol=2e-2), max_err

    print("KERNEL_OK")
</pallas_src>

<mosaic_0001>
module attributes {stable_mosaic.version = 11 : i64} {
  func.func @qkv_proj_kernel(%arg0: i32, %arg1: i32, %arg2: i32, %arg3: memref<1x32x128xbf16, #tpu.memory_space<vmem>>, %arg4: memref<1x128x32xbf16, #tpu.memory_space<vmem>>, %arg5: memref<1x128x32xbf16, #tpu.memory_space<vmem>>, %arg6: memref<1x128x32xbf16, #tpu.memory_space<vmem>>, %arg7: memref<1x1x32x32xbf16, #tpu.memory_space<vmem>>, %arg8: memref<1x1x32x32xbf16, #tpu.memory_space<vmem>>, %arg9: memref<1x1x32x32xbf16, #tpu.memory_space<vmem>>) attributes {dimension_semantics = [#tpu.dimension_semantics<parallel>, #tpu.dimension_semantics<parallel>, #tpu.dimension_semantics<arbitrary>], iteration_bounds = array<i64: 2, 2, 4>, scalar_prefetch = 0 : i64, scratch_operands = 0 : i64, tpu.core_type = #tpu.core_type<tc>, window_params = [{transform_indices = @transform_0, window_bounds = array<i64: 1, 32, 128>}, {transform_indices = @transform_1, window_bounds = array<i64: 1, 128, 32>}, {transform_indices = @transform_2, window_bounds = array<i64: 1, 128, 32>}, {transform_indices = @transform_3, window_bounds = array<i64: 1, 128, 32>}, {transform_indices = @transform_4, window_bounds = array<i64: 1, 1, 32, 32>}, {transform_indices = @transform_5, window_bounds = array<i64: 1, 1, 32, 32>}, {transform_indices = @transform_6, window_bounds = array<i64: 1, 1, 32, 32>}]} {
    %c0 = arith.constant 0 : index
    %c0_0 = arith.constant 0 : index
    %c0_1 = arith.constant 0 : index
    %0 = vector.load %arg3[%c0, %c0_0, %c0_1] : memref<1x32x128xbf16, #tpu.memory_space<vmem>>, vector<1x32x128xbf16>
    %1 = vector.shape_cast %0 : vector<1x32x128xbf16> to vector<32x128xbf16>
    %c0_2 = arith.constant 0 : index
    %c0_3 = arith.constant 0 : index
    %c0_4 = arith.constant 0 : index
    %2 = vector.load %arg4[%c0_2, %c0_3, %c0_4] : memref<1x128x32xbf16, #tpu.memory_space<vmem>>, vector<1x128x32xbf16>
    %3 = vector.shape_cast %2 : vector<1x128x32xbf16> to vector<128x32xbf16>
    %cst = arith.constant dense<0.000000e+00> : vector<32x32xf32>
    %4 = tpu.matmul %1, %3, %cst {dimension_numbers = #tpu.dot_dimension_numbers<[1], [0], [0], [1], [0, 0, 1, 1], [], []>} : vector<32x128xbf16>, vector<128x32xbf16>, vector<32x32xf32> -> vector<32x32xf32>
    %5 = arith.truncf %4 : vector<32x32xf32> to vector<32x32xbf16>
    %c0_5 = arith.constant 0 : index
    %c0_6 = arith.constant 0 : index
    %c0_7 = arith.constant 0 : index
    %c0_8 = arith.constant 0 : index
    %6 = vector.load %arg7[%c0_5, %c0_6, %c0_7, %c0_8] : memref<1x1x32x32xbf16, #tpu.memory_space<vmem>>, vector<1x1x32x32xbf16>
    %7 = vector.shape_cast %6 : vector<1x1x32x32xbf16> to vector<32x32xbf16>
    %8 = vector.shape_cast %5 : vector<32x32xbf16> to vector<1x1x32x32xbf16>
    tpu.vector_store %arg7[%c0_5, %c0_6, %c0_7, %c0_8], %8 {strides = array<i32>} : memref<1x1x32x32xbf16, #tpu.memory_space<vmem>>, vector<1x1x32x32xbf16>,
    %c0_9 = arith.constant 0 : index
    %c0_10 = arith.constant 0 : index
    %c0_11 = arith.constant 0 : index
    %9 = vector.load %arg5[%c0_9, %c0_10, %c0_11] : memref<1x128x32xbf16, #tpu.memory_space<vmem>>, vector<1x128x32xbf16>
    %10 = vector.shape_cast %9 : vector<1x128x32xbf16> to vector<128x32xbf16>
    %cst_12 = arith.constant dense<0.000000e+00> : vector<32x32xf32>
    %11 = tpu.matmul %1, %10, %cst_12 {dimension_numbers = #tpu.dot_dimension_numbers<[1], [0], [0], [1], [0, 0, 1, 1], [], []>} : vector<32x128xbf16>, vector<128x32xbf16>, vector<32x32xf32> -> vector<32x32xf32>
    %12 = arith.truncf %11 : vector<32x32xf32> to vector<32x32xbf16>
    %c0_13 = arith.constant 0 : index
    %c0_14 = arith.constant 0 : index
    %c0_15 = arith.constant 0 : index
    %c0_16 = arith.constant 0 : index
    %13 = vector.load %arg8[%c0_13, %c0_14, %c0_15, %c0_16] : memref<1x1x32x32xbf16, #tpu.memory_space<vmem>>, vector<1x1x32x32xbf16>
    %14 = vector.shape_cast %13 : vector<1x1x32x32xbf16> to vector<32x32xbf16>
    %15 = vector.shape_cast %12 : vector<32x32xbf16> to vector<1x1x32x32xbf16>
    tpu.vector_store %arg8[%c0_13, %c0_14, %c0_15, %c0_16], %15 {strides = array<i32>} : memref<1x1x32x32xbf16, #tpu.memory_space<vmem>>, vector<1x1x32x32xbf16>,
    %c0_17 = arith.constant 0 : index
    %c0_18 = arith.constant 0 : index
    %c0_19 = arith.constant 0 : index
    %16 = vector.load %arg6[%c0_17, %c0_18, %c0_19] : memref<1x128x32xbf16, #tpu.memory_space<vmem>>, vector<1x128x32xbf16>
    %17 = vector.shape_cast %16 : vector<1x128x32xbf16> to vector<128x32xbf16>
    %cst_20 = arith.constant dense<0.000000e+00> : vector<32x32xf32>
    %18 = tpu.matmul %1, %17, %cst_20 {dimension_numbers = #tpu.dot_dimension_numbers<[1], [0], [0], [1], [0, 0, 1, 1], [], []>} : vector<32x128xbf16>, vector<128x32xbf16>, vector<32x32xf32> -> vector<32x32xf32>
    %19 = arith.truncf %18 : vector<32x32xf32> to vector<32x32xbf16>
    %c0_21 = arith.constant 0 : index
    %c0_22 = arith.constant 0 : index
    %c0_23 = arith.constant 0 : index
    %c0_24 = arith.constant 0 : index
    %20 = vector.load %arg9[%c0_21, %c0_22, %c0_23, %c0_24] : memref<1x1x32x32xbf16, #tpu.memory_space<vmem>>, vector<1x1x32x32xbf16>
    %21 = vector.shape_cast %20 : vector<1x1x32x32xbf16> to vector<32x32xbf16>
    %22 = vector.shape_cast %19 : vector<32x32xbf16> to vector<1x1x32x32xbf16>
    tpu.vector_store %arg9[%c0_21, %c0_22, %c0_23, %c0_24], %22 {strides = array<i32>} : memref<1x1x32x32xbf16, #tpu.memory_space<vmem>>, vector<1x1x32x32xbf16>,
    return
  }
  func.func @transform_0(%arg0: i32, %arg1: i32, %arg2: i32) -> (i32, i32, i32) {
    %c0_i32 = arith.constant 0 : i32
    %c0_i32_0 = arith.constant 0 : i32
    return %arg0, %arg1, %c0_i32 : i32, i32, i32
  }
  func.func @transform_1(%arg0: i32, %arg1: i32, %arg2: i32) -> (i32, i32, i32) {
    %c0_i32 = arith.constant 0 : i32
    %c0_i32_0 = arith.constant 0 : i32
    %c0_i32_1 = arith.constant 0 : i32
    return %arg2, %c0_i32, %c0_i32_0 : i32, i32, i32
  }
  func.func @transform_2(%arg0: i32, %arg1: i32, %arg2: i32) -> (i32, i32, i32) {
    %c0_i32 = arith.constant 0 : i32
    %c0_i32_0 = arith.constant 0 : i32
    %c0_i32_1 = arith.constant 0 : i32
    return %arg2, %c0_i32, %c0_i32_0 : i32, i32, i32
  }
  func.func @transform_3(%arg0: i32, %arg1: i32, %arg2: i32) -> (i32, i32, i32) {
    %c0_i32 = arith.constant 0 : i32
    %c0_i32_0 = arith.constant 0 : i32
    %c0_i32_1 = arith.constant 0 : i32
    return %arg2, %c0_i32, %c0_i32_0 : i32, i32, i32
  }
  func.func @transform_4(%arg0: i32, %arg1: i32, %arg2: i32) -> (i32, i32, i32, i32) {
    %c0_i32 = arith.constant 0 : i32
    %c0_i32_0 = arith.constant 0 : i32
    return %arg0, %arg2, %arg1, %c0_i32 : i32, i32, i32, i32
  }
  func.func @transform_5(%arg0: i32, %arg1: i32, %arg2: i32) -> (i32, i32, i32, i32) {
    %c0_i32 = arith.constant 0 : i32
    %c0_i32_0 = arith.constant 0 : i32
    return %arg0, %arg2, %arg1, %c0_i32 : i32, i32, i32, i32
  }
  func.func @transform_6(%arg0: i32, %arg1: i32, %arg2: i32) -> (i32, i32, i32, i32) {
    %c0_i32 = arith.constant 0 : i32
    %c0_i32_0 = arith.constant 0 : i32
    return %arg0, %arg2, %arg1, %c0_i32 : i32, i32, i32, i32
  }
}

</mosaic_0001>

<llo_original>
// kernel: tpu_custom_call.1
$region0: #{tpu_custom_call.1}
  #allocation0 [shape = 'u32[]', space=smem, size = 0x4, offset = 0x4, fixed_abs, tag = 'smem constant byte address 0x4 - core index']
  #allocation1 [shape = 'u32[144,128]{1,0:T(1,128)}', space=vmem, size = 0x12000, scoped, tag = 'internal scratch']
  %s0 = inlined_call_operand.vmem [shape: bf16[2,64,128], index: 0, kind: input, shape index: {}]
  %s1 = inlined_call_operand.vmem [shape: bf16[4,128,32], index: 1, kind: input, shape index: {}]
  %s2 = inlined_call_operand.vmem [shape: bf16[4,128,32], index: 2, kind: input, shape index: {}]
  %s3 = inlined_call_operand.vmem [shape: bf16[4,128,32], index: 3, kind: input, shape index: {}]
  %s4 = inlined_call_operand.vmem [shape: bf16[2,4,64,32], index: 4, kind: output, shape index: {0}]
  %s5 = inlined_call_operand.vmem [shape: bf16[2,4,64,32], index: 5, kind: output, shape index: {1}]
  %s6 = inlined_call_operand.vmem [shape: bf16[2,4,64,32], index: 6, kind: output, shape index: {2}]
  %7 = xla_tuple %s4, %s5, %s6
  %s8 = sld [smem:[#allocation0]]
  $region65: #{tpu_custom_call.1} parent=0
    _
  %s10 = ssub.s32 1, %s8
  %s11 = scalar_select 0, %s10, %s8
  loop: start=0, step=1, limit=18
  $region2: #{tpu_custom_call.1} parent=0 // loop_pre_header
    _
  $region3: #{tpu_custom_call.1} parent=0 // loop_header
    %s13 = sphi 0, %s17
    %p14 = scmp.ge.s32.totalorder %s13, 18
    %s20 = sphi 0, %s39
    %s21 = sphi 0, %s35
    %s22 = sphi 0, %s31
    %s23 = sphi 0, %s20
    %s24 = sphi 0, %s21
    %s25 = sphi 0, %s22
    %s26 = sphi 0, %s23
    %s27 = sphi 0, %s24
    %s28 = sphi 0, %s25
    %s44 = sphi 0, %s46
    %s47 = sphi 0, %s44
    %s48 = sphi 0, %s47
    %s64 = sphi 0, %s48
    %s70 = sphi 0, %s72
    %s73 = sphi 0, %s70
    %s74 = sphi 0, %s73
    %s90 = sphi 0, %s74
    %s96 = sphi 0, %s98
    %s99 = sphi 0, %s96
    %s100 = sphi 0, %s99
    %s116 = sphi 0, %s100
    %s122 = sphi 0, %s124
    %s125 = sphi 0, %s122
    %s126 = sphi 0, %s125
    %s142 = sphi 0, %s126
    %s152 = sphi 0, %s154
    %s155 = sphi 0, %s152
    %s156 = sphi 0, %s155
    %s172 = sphi 0, %s156
    %s182 = sphi 0, %s184
    %s185 = sphi 0, %s182
    %s186 = sphi 0, %s185
    %s202 = sphi 0, %s186
    %s212 = sphi 0, %s214
    %s215 = sphi 0, %s212
    %s216 = sphi 0, %s215
    %s232 = sphi 0, %s216
  $region4: #{tpu_custom_call.1} parent=0 // loop_header_branch
    %16 = sbr.rel (%p14) target = $region8
  $region5: #{tpu_custom_call.1} parent=0 // loop_body
    %s18 = ssub.s32 %s13, 1
    %s19 = ssub.s32 %s13, 2
    %s29 = sadd.s32 1, %s22
    %p30 = scmp.ge.s32.totalorder %s29, 4
    %s31 = scalar_select %p30, 0, %s29
    %s32 = sadd.s32 1, %s21
    %s33 = scalar_select %p30, %s32, %s21
    %p34 = scmp.ge.s32.totalorder %s33, 2
    %s35 = scalar_select %p34, 0, %s33
    %s36 = sadd.s32 1, %s20
    %s37 = scalar_select %p34, %s36, %s20
    %p38 = scmp.ge.s32.totalorder %s37, 2
    %s39 = scalar_select %p38, 0, %s37
    %s40 = ssub.s32 %s20, %s39
    %s41 = ssub.s32 %s21, %s35
    %s42 = sor.u32 %s40, %s41
    %p43 = scmp.eq.s32.totalorder %s42, 0
    %s45 = sadd.s32 %s44, 1
    %s46 = scalar_select %p43, %s44, %s45
    %p49 = pneg %p43
    %p50 = scmp.eq.s32.totalorder %s13, 15
    %p51 = por %p49, %p50
    %p52 = scmp.ne.s32.totalorder %s44, %s47
    %p53 = scmp.eq.s32.totalorder %s13, 0
    %p54 = por %p52, %p53
    %p55 = scmp.ne.s32.totalorder %s44, %s47
    %p56 = scmp.eq.s32.totalorder %s18, 15
    %p57 = por %p55, %p56
    %p58 = scmp.ne.s32.totalorder %s47, %s48
    %p59 = scmp.eq.s32.totalorder %s18, 0
    %p60 = por %p58, %p59
    %p61 = scmp.ne.s32.totalorder %s47, %s48
    %p62 = scmp.eq.s32.totalorder %s19, 15
    %p63 = por %p61, %p62
    %p65 = scmp.ne.s32.totalorder %s48, %s64
    %p66 = scmp.eq.s32.totalorder %s19, 0
    %p67 = por %p65, %p66
    %s68 = ssub.s32 %s22, %s31
    %p69 = scmp.eq.s32.totalorder %s68, 0
    %s71 = sadd.s32 %s70, 1
    %s72 = scalar_select %p69, %s70, %s71
    %p75 = pneg %p69
    %p76 = scmp.eq.s32.totalorder %s13, 15
    %p77 = por %p75, %p76
    %p78 = scmp.ne.s32.totalorder %s70, %s73
    %p79 = scmp.eq.s32.totalorder %s13, 0
    %p80 = por %p78, %p79
    %p81 = scmp.ne.s32.totalorder %s70, %s73
    %p82 = scmp.eq.s32.totalorder %s18, 15
    %p83 = por %p81, %p82
    %p84 = scmp.ne.s32.totalorder %s73, %s74
    %p85 = scmp.eq.s32.totalorder %s18, 0
    %p86 = por %p84, %p85
    %p87 = scmp.ne.s32.totalorder %s73, %s74
    %p88 = scmp.eq.s32.totalorder %s19, 15
    %p89 = por %p87, %p88
    %p91 = scmp.ne.s32.totalorder %s74, %s90
    %p92 = scmp.eq.s32.totalorder %s19, 0
    %p93 = por %p91, %p92
    %s94 = ssub.s32 %s22, %s31
    %p95 = scmp.eq.s32.totalorder %s94, 0
    %s97 = sadd.s32 %s96, 1
    %s98 = scalar_select %p95, %s96, %s97
    %p101 = pneg %p95
    %p102 = scmp.eq.s32.totalorder %s13, 15
    %p103 = por %p101, %p102
    %p104 = scmp.ne.s32.totalorder %s96, %s99
    %p105 = scmp.eq.s32.totalorder %s13, 0
    %p106 = por %p104, %p105
    %p107 = scmp.ne.s32.totalorder %s96, %s99
    %p108 = scmp.eq.s32.totalorder %s18, 15
    %p109 = por %p107, %p108
    %p110 = scmp.ne.s32.totalorder %s99, %s100
    %p111 = scmp.eq.s32.totalorder %s18, 0
    %p112 = por %p110, %p111
    %p113 = scmp.ne.s32.totalorder %s99, %s100
    %p114 = scmp.eq.s32.totalorder %s19, 15
    %p115 = por %p113, %p114
    %p117 = scmp.ne.s32.totalorder %s100, %s116
    %p118 = scmp.eq.s32.totalorder %s19, 0
    %p119 = por %p117, %p118
    %s120 = ssub.s32 %s22, %s31
    %p121 = scmp.eq.s32.totalorder %s120, 0
    %s123 = sadd.s32 %s122, 1
    %s124 = scalar_select %p121, %s122, %s123
    %p127 = pneg %p121
    %p128 = scmp.eq.s32.totalorder %s13, 15
    %p129 = por %p127, %p128
    %p130 = scmp.ne.s32.totalorder %s122, %s125
    %p131 = scmp.eq.s32.totalorder %s13, 0
    %p132 = por %p130, %p131
    %p133 = scmp.ne.s32.totalorder %s122, %s125
    %p134 = scmp.eq.s32.totalorder %s18, 15
    %p135 = por %p133, %p134
    %p136 = scmp.ne.s32.totalorder %s125, %s126
    %p137 = scmp.eq.s32.totalorder %s18, 0
    %p138 = por %p136, %p137
    %p139 = scmp.ne.s32.totalorder %s125, %s126
    %p140 = scmp.eq.s32.totalorder %s19, 15
    %p141 = por %p139, %p140
    %p143 = scmp.ne.s32.totalorder %s126, %s142
    %p144 = scmp.eq.s32.totalorder %s19, 0
    %p145 = por %p143, %p144
    %s146 = ssub.s32 %s20, %s39
    %s147 = ssub.s32 %s22, %s31
    %s148 = sor.u32 %s146, %s147
    %s149 = ssub.s32 %s21, %s35
    %s150 = sor.u32 %s148, %s149
    %p151 = scmp.eq.s32.totalorder %s150, 0
    %s153 = sadd.s32 %s152, 1
    %s154 = scalar_select %p151, %s152, %s153
    %p157 = pneg %p151
    %p158 = scmp.eq.s32.totalorder %s13, 15
    %p159 = por %p157, %p158
    %p160 = scmp.ne.s32.totalorder %s152, %s155
    %p161 = scmp.eq.s32.totalorder %s13, 0
    %p162 = por %p160, %p161
    %p163 = scmp.ne.s32.totalorder %s152, %s155
    %p164 = scmp.eq.s32.totalorder %s18, 15
    %p165 = por %p163, %p164
    %p166 = scmp.ne.s32.totalorder %s155, %s156
    %p167 = scmp.eq.s32.totalorder %s18, 0
    %p168 = por %p166, %p167
    %p169 = scmp.ne.s32.totalorder %s155, %s156
    %p170 = scmp.eq.s32.totalorder %s19, 15
    %p171 = por %p169, %p170
    %p173 = scmp.ne.s32.totalorder %s156, %s172
    %p174 = scmp.eq.s32.totalorder %s19, 0
    %p175 = por %p173, %p174
    %s176 = ssub.s32 %s20, %s39
    %s177 = ssub.s32 %s22, %s31
    %s178 = sor.u32 %s176, %s177
    %s179 = ssub.s32 %s21, %s35
    %s180 = sor.u32 %s178, %s179
    %p181 = scmp.eq.s32.totalorder %s180, 0
    %s183 = sadd.s32 %s182, 1
    %s184 = scalar_select %p181, %s182, %s183
    %p187 = pneg %p181
    %p188 = scmp.eq.s32.totalorder %s13, 15
    %p189 = por %p187, %p188
    %p190 = scmp.ne.s32.totalorder %s182, %s185
    %p191 = scmp.eq.s32.totalorder %s13, 0
    %p192 = por %p190, %p191
    %p193 = scmp.ne.s32.totalorder %s182, %s185
    %p194 = scmp.eq.s32.totalorder %s18, 15
    %p195 = por %p193, %p194
    %p196 = scmp.ne.s32.totalorder %s185, %s186
    %p197 = scmp.eq.s32.totalorder %s18, 0
    %p198 = por %p196, %p197
    %p199 = scmp.ne.s32.totalorder %s185, %s186
    %p200 = scmp.eq.s32.totalorder %s19, 15
    %p201 = por %p199, %p200
    %p203 = scmp.ne.s32.totalorder %s186, %s202
    %p204 = scmp.eq.s32.totalorder %s19, 0
    %p205 = por %p203, %p204
    %s206 = ssub.s32 %s20, %s39
    %s207 = ssub.s32 %s22, %s31
    %s208 = sor.u32 %s206, %s207
    %s209 = ssub.s32 %s21, %s35
    %s210 = sor.u32 %s208, %s209
    %p211 = scmp.eq.s32.totalorder %s210, 0
    %s213 = sadd.s32 %s212, 1
    %s214 = scalar_select %p211, %s212, %s213
    %p217 = pneg %p211
    %p218 = scmp.eq.s32.totalorder %s13, 15
    %p219 = por %p217, %p218
    %p220 = scmp.ne.s32.totalorder %s212, %s215
    %p221 = scmp.eq.s32.totalorder %s13, 0
    %p222 = por %p220, %p221
    %p223 = scmp.ne.s32.totalorder %s212, %s215
    %p224 = scmp.eq.s32.totalorder %s18, 15
    %p225 = por %p223, %p224
    %p226 = scmp.ne.s32.totalorder %s215, %s216
    %p227 = scmp.eq.s32.totalorder %s18, 0
    %p228 = por %p226, %p227
    %p229 = scmp.ne.s32.totalorder %s215, %s216
    %p230 = scmp.eq.s32.totalorder %s19, 15
    %p231 = por %p229, %p230
    %p233 = scmp.ne.s32.totalorder %s216, %s232
    %p234 = scmp.eq.s32.totalorder %s19, 0
    %p235 = por %p233, %p234
    %p236 = scmp.le.s32.totalorder 1, %s13
    %p237 = scmp.lt.s32.totalorder %s13, 17
    %p238 = pnand %p236, %p237
    %p239 = pneg %p238
    // Predicated region
    $region9: #{tpu_custom_call.1} parent=5 // pred_check
      _
    $region10: #{tpu_custom_call.1} parent=5 // pred_check_branch
      %241 = sbr.rel (%p238) target = $region12
    $region11: #{tpu_custom_call.1} parent=5 // pred_region
      %s242 = ssub.s32 %s13, 1
    $region12: #{tpu_custom_call.1} parent=5 // pred_fallthru
      _
    %p243 = scmp.lt.s32.totalorder %s13, 16
    // Predicated region
    $region13: #{tpu_custom_call.1} parent=5 // pred_check
      %p244 = pneg %p243
    $region14: #{tpu_custom_call.1} parent=5 // pred_check_branch
      %246 = sbr.rel (%p244) target = $region16
    $region15: #{tpu_custom_call.1} parent=5 // pred_region
      // Predicated region
      $region17: #{tpu_custom_call.1} parent=15 // pred_check
        %p247 = pneg %p54
      $region18: #{tpu_custom_call.1} parent=15 // pred_check_branch
        %249 = sbr.rel (%p247) target = $region20
      $region19: #{tpu_custom_call.1} parent=15 // pred_region
        %s250 = smul.u32 4, %s21
        %p251 = scmp.lt.s32.totalorder %s20, 1
        %s252 = scalar_select %p251, %s20, 1
        %p253 = scmp.lt.s32.totalorder %s250, 7
        %s254 = scalar_select %p253, %s250, 7
        %s255 = smul.addr %s252, 8
        %s256 = sadd.s32 %s254, %s255
        %s257 = smul.addr %s256, 4
        %s258 = scalar_lea.vmem %s0, %s257
        %s259 = smul.u32 4, %s21
      $region20: #{tpu_custom_call.1} parent=15 // pred_fallthru
        _
      // Predicated region
      $region21: #{tpu_custom_call.1} parent=15 // pred_check
        %p260 = pneg %p80
      $region22: #{tpu_custom_call.1} parent=15 // pred_check_branch
        %262 = sbr.rel (%p260) target = $region24
      $region23: #{tpu_custom_call.1} parent=15 // pred_region
        %p263 = scmp.lt.s32.totalorder %s22, 3
        %s264 = scalar_select %p263, %s22, 3
        %s265 = smul.addr %s264, 16
        %s266 = smul.addr %s265, 4
        %s267 = scalar_lea.vmem %s1, %s266
      $region24: #{tpu_custom_call.1} parent=15 // pred_fallthru
        _
      // Predicated region
      $region25: #{tpu_custom_call.1} parent=15 // pred_check
        %p268 = pneg %p106
      $region26: #{tpu_custom_call.1} parent=15 // pred_check_branch
        %270 = sbr.rel (%p268) target = $region28
      $region27: #{tpu_custom_call.1} parent=15 // pred_region
        %p271 = scmp.lt.s32.totalorder %s22, 3
        %s272 = scalar_select %p271, %s22, 3
        %s273 = smul.addr %s272, 16
        %s274 = smul.addr %s273, 4
        %s275 = scalar_lea.vmem %s2, %s274
      $region28: #{tpu_custom_call.1} parent=15 // pred_fallthru
        _
      // Predicated region
      $region29: #{tpu_custom_call.1} parent=15 // pred_check
        %p276 = pneg %p132
      $region30: #{tpu_custom_call.1} parent=15 // pred_check_branch
        %278 = sbr.rel (%p276) target = $region32
      $region31: #{tpu_custom_call.1} parent=15 // pred_region
        %p279 = scmp.lt.s32.totalorder %s22, 3
        %s280 = scalar_select %p279, %s22, 3
        %s281 = smul.addr %s280, 16
        %s282 = smul.addr %s281, 4
        %s283 = scalar_lea.vmem %s3, %s282
      $region32: #{tpu_custom_call.1} parent=15 // pred_fallthru
        _
    $region16: #{tpu_custom_call.1} parent=5 // pred_fallthru
      _
    %p284 = scmp.le.s32.totalorder 1, %s13
    %p285 = scmp.lt.s32.totalorder %s13, 17
    %p286 = pnand %p284, %p285
    %p287 = pneg %p286
    // Predicated region
    $region33: #{tpu_custom_call.1} parent=5 // pred_check
      _
    $region34: #{tpu_custom_call.1} parent=5 // pred_check_branch
      %289 = sbr.rel (%p286) target = $region36
    $region35: #{tpu_custom_call.1} parent=5 // pred_region
      %s290 = ssub.s32 %s13, 1
      %s291 = smul.u32 4, %s24
      %p292 = scmp.lt.s32.totalorder %s23, 1
      %s293 = scalar_select %p292, %s23, 1
      %p294 = scmp.lt.s32.totalorder %s291, 7
      %s295 = scalar_select %p294, %s291, 7
      %s296 = smul.addr %s293, 8
      %s297 = sadd.s32 %s295, %s296
      %s298 = smul.addr %s297, 4
      %s299 = scalar_lea.vmem %s0, %s298
      %p300 = pneg %p60
      %p301 = pneg %p57
      %p302 = scmp.lt.s32.totalorder %s25, 3
      %s303 = scalar_select %p302, %s25, 3
      %s304 = smul.addr %s303, 16
      %s305 = smul.addr %s304, 4
      %s306 = scalar_lea.vmem %s1, %s305
      %p307 = pneg %p86
      %p308 = pneg %p83
      %p309 = scmp.lt.s32.totalorder %s25, 3
      %s310 = scalar_select %p309, %s25, 3
      %s311 = smul.addr %s310, 16
      %s312 = smul.addr %s311, 4
      %s313 = scalar_lea.vmem %s2, %s312
      %p314 = pneg %p112
      %p315 = pneg %p109
      %p316 = scmp.lt.s32.totalorder %s25, 3
      %s317 = scalar_select %p316, %s25, 3
      %s318 = smul.addr %s317, 16
      %s319 = smul.addr %s318, 4
      %s320 = scalar_lea.vmem %s3, %s319
      %p321 = pneg %p138
      %p322 = pneg %p135
      %p323 = pneg %p168
      %p324 = pneg %p165
      %s325 = smul.u32 4, %s24
      %p326 = scmp.lt.s32.totalorder %s23, 1
      %s327 = scalar_select %p326, %s23, 1
      %p328 = scmp.lt.s32.totalorder %s25, 3
      %s329 = scalar_select %p328, %s25, 3
      %p330 = scmp.lt.s32.totalorder %s325, 7
      %s331 = scalar_select %p330, %s325, 7
      %s332 = smul.addr %s329, 8
      %s333 = sadd.s32 %s331, %s332
      %s334 = smul.addr %s327, 32
      %s335 = sadd.s32 %s333, %s334
      %s336 = smul.addr %s335, 4
      %s337 = scalar_lea.vmem %s4, %s336
      %p338 = pneg %p198
      %p339 = pneg %p195
      %s340 = smul.u32 4, %s24
      %p341 = scmp.lt.s32.totalorder %s23, 1
      %s342 = scalar_select %p341, %s23, 1
      %p343 = scmp.lt.s32.totalorder %s25, 3
      %s344 = scalar_select %p343, %s25, 3
      %p345 = scmp.lt.s32.totalorder %s340, 7
      %s346 = scalar_select %p345, %s340, 7
      %s347 = smul.addr %s344, 8
      %s348 = sadd.s32 %s346, %s347
      %s349 = smul.addr %s342, 32
      %s350 = sadd.s32 %s348, %s349
      %s351 = smul.addr %s350, 4
      %s352 = scalar_lea.vmem %s5, %s351
      %p353 = pneg %p228
      %p354 = pneg %p225
      %s355 = smul.u32 4, %s24
      %p356 = scmp.lt.s32.totalorder %s23, 1
      %s357 = scalar_select %p356, %s23, 1
      %p358 = scmp.lt.s32.totalorder %s25, 3
      %s359 = scalar_select %p358, %s25, 3
      %p360 = scmp.lt.s32.totalorder %s355, 7
      %s361 = scalar_select %p360, %s355, 7
      %s362 = smul.addr %s359, 8
      %s363 = sadd.s32 %s361, %s362
      %s364 = smul.addr %s357, 32
      %s365 = sadd.s32 %s363, %s364
      %s366 = smul.addr %s365, 4
      %s367 = scalar_lea.vmem %s6, %s366
      %s368 = smul.u32 4, %s24
      %p369 = scmp.lt.s32.totalorder %s23, 1
      %s370 = scalar_select %p369, %s23, 1
      %p371 = scmp.lt.s32.totalorder %s368, 7
      %s372 = scalar_select %p371, %s368, 7
      %s373 = smul.addr %s370, 8
      %s374 = sadd.s32 %s372, %s373
      %s375 = smul.addr %s374, 4
      %s376 = scalar_lea.vmem %s0, %s375
      %s377 = smul.u32 4, %s24
      %p378 = scmp.lt.s32.totalorder %s25, 3
      %s379 = scalar_select %p378, %s25, 3
      %s380 = smul.addr %s379, 16
      %s381 = smul.addr %s380, 4
      %s382 = scalar_lea.vmem %s1, %s381
      %p383 = scmp.lt.s32.totalorder %s25, 3
      %s384 = scalar_select %p383, %s25, 3
      %s385 = smul.addr %s384, 16
      %s386 = smul.addr %s385, 4
      %s387 = scalar_lea.vmem %s2, %s386
      %p388 = scmp.lt.s32.totalorder %s25, 3
      %s389 = scalar_select %p388, %s25, 3
      %s390 = smul.addr %s389, 16
      %s391 = smul.addr %s390, 4
      %s392 = scalar_lea.vmem %s3, %s391
      %s393 = smul.u32 4, %s24
      %p394 = scmp.lt.s32.totalorder %s23, 1
      %s395 = scalar_select %p394, %s23, 1
      %p396 = scmp.lt.s32.totalorder %s25, 3
      %s397 = scalar_select %p396, %s25, 3
      %p398 = scmp.lt.s32.totalorder %s393, 7
      %s399 = scalar_select %p398, %s393, 7
      %s400 = smul.addr %s397, 8
      %s401 = sadd.s32 %s399, %s400
      %s402 = smul.addr %s395, 32
      %s403 = sadd.s32 %s401, %s402
      %s404 = smul.addr %s403, 4
      %s405 = scalar_lea.vmem %s4, %s404
      %s406 = smul.u32 4, %s24
      %s407 = smul.u32 4, %s24
      %p408 = scmp.lt.s32.totalorder %s23, 1
      %s409 = scalar_select %p408, %s23, 1
      %p410 = scmp.lt.s32.totalorder %s25, 3
      %s411 = scalar_select %p410, %s25, 3
      %p412 = scmp.lt.s32.totalorder %s407, 7
      %s413 = scalar_select %p412, %s407, 7
      %s414 = smul.addr %s411, 8
      %s415 = sadd.s32 %s413, %s414
      %s416 = smul.addr %s409, 32
      %s417 = sadd.s32 %s415, %s416
      %s418 = smul.addr %s417, 4
      %s419 = scalar_lea.vmem %s5, %s418
      %s420 = smul.u32 4, %s24
      %s421 = smul.u32 4, %s24
      %p422 = scmp.lt.s32.totalorder %s23, 1
      %s423 = scalar_select %p422, %s23, 1
      %p424 = scmp.lt.s32.totalorder %s25, 3
      %s425 = scalar_select %p424, %s25, 3
      %p426 = scmp.lt.s32.totalorder %s421, 7
      %s427 = scalar_select %p426, %s421, 7
      %s428 = smul.addr %s425, 8
      %s429 = sadd.s32 %s427, %s428
      %s430 = smul.addr %s423, 32
      %s431 = sadd.s32 %s429, %s430
      %s432 = smul.addr %s431, 4
      %s433 = scalar_lea.vmem %s6, %s432
      %s434 = smul.u32 4, %s24
      %v436 = vld [vmem:[%s376] sm:$0xf]
      %v437 = vld [vmem:[%s376 + $0x4] sm:$0xf]
      %v438 = vld [vmem:[%s376 + $0x8] sm:$0xf]
      %v439 = vld [vmem:[%s376 + $0xc] sm:$0xf]
      %v440 = vld [vmem:[%s382] sm:$0xf]
      %v441 = vld [vmem:[%s382 + $0x4] sm:$0xf]
      %v442 = vld [vmem:[%s382 + $0x8] sm:$0xf]
      %v443 = vld [vmem:[%s382 + $0xc] sm:$0xf]
      %v444 = vld [vmem:[%s382 + $0x10] sm:$0xf]
      %v445 = vld [vmem:[%s382 + $0x14] sm:$0xf]
      %v446 = vld [vmem:[%s382 + $0x18] sm:$0xf]
      %v447 = vld [vmem:[%s382 + $0x1c] sm:$0xf]
      %v448 = vld [vmem:[%s382 + $0x20] sm:$0xf]
      %v449 = vld [vmem:[%s382 + $0x24] sm:$0xf]
      %v450 = vld [vmem:[%s382 + $0x28] sm:$0xf]
      %v451 = vld [vmem:[%s382 + $0x2c] sm:$0xf]
      %v452 = vld [vmem:[%s382 + $0x30] sm:$0xf]
      %v453 = vld [vmem:[%s382 + $0x34] sm:$0xf]
      %v454 = vld [vmem:[%s382 + $0x38] sm:$0xf]
      %v455 = vld [vmem:[%s382 + $0x3c] sm:$0xf]
      %v460 = vunpack.c.l.b16 %v436
      %v461 = vunpack.c.l.b16 %v437
      %v462 = vunpack.c.l.b16 %v438
      %v463 = vunpack.c.l.b16 %v439
      %v464 = vpack.c.b16 %v461, %v460
      %v465 = vpack.c.b16 %v463, %v462
      %v484 = vunpack.c.l.b16 %v440
      %v485 = vunpack.c.l.b16 %v441
      %v486 = vunpack.c.l.b16 %v442
      %v487 = vunpack.c.l.b16 %v443
      %v488 = vunpack.c.l.b16 %v444
      %v489 = vunpack.c.l.b16 %v445
      %v490 = vunpack.c.l.b16 %v446
      %v491 = vunpack.c.l.b16 %v447
      %v492 = vunpack.c.l.b16 %v448
      %v493 = vunpack.c.l.b16 %v449
      %v494 = vunpack.c.l.b16 %v450
      %v495 = vunpack.c.l.b16 %v451
      %v496 = vunpack.c.l.b16 %v452
      %v497 = vunpack.c.l.b16 %v453
      %v498 = vunpack.c.l.b16 %v454
      %v499 = vunpack.c.l.b16 %v455
      %v500 = vpack.c.b16 %v485, %v484
      %v501 = vpack.c.b16 %v487, %v486
      %v502 = vpack.c.b16 %v489, %v488
      %v503 = vpack.c.b16 %v491, %v490
      %v504 = vpack.c.b16 %v493, %v492
      %v505 = vpack.c.b16 %v495, %v494
      %v506 = vpack.c.b16 %v497, %v496
      %v507 = vpack.c.b16 %v499, %v498
      %516 = vmatprep.subr.bf16.mxu0 0
      %517 = vmatpush1.bf16.msra.mxu0 %v507
      %518 = vmatprep.subr.bf16.mxu0 0
      %519 = vmatpush1.bf16.msra.mxu0 %v506
      %520 = vmatprep.subr.bf16.mxu0 0
      %521 = vmatpush1.bf16.msra.mxu0 %v505
      %522 = vmatprep.subr.bf16.mxu0 0
      %523 = vmatpush1.bf16.msra.mxu0 %v504
      %524 = vmatprep.subr.bf16.mxu0 0
      %525 = vmatpush1.bf16.msra.mxu0 %v503
      %526 = vmatprep.subr.bf16.mxu0 0
      %527 = vmatpush1.bf16.msra.mxu0 %v502
      %528 = vmatprep.subr.bf16.mxu0 0
      %529 = vmatpush1.bf16.msra.mxu0 %v501
      %530 = vmatprep.subr.bf16.mxu0 0
      %531 = vmatpush1.bf16.msra.mxu0 %v500
      %532 = vmatprep.subr.bf16.mxu0 0
      %533 = vmatpush2.bf16.msra.mxu0 0
      %534 = vmatprep.subr.bf16.mxu0 0
      %535 = vmatpush2.bf16.msra.mxu0 0
      %536 = vmatprep.subr.bf16.mxu0 0
      %537 = vmatpush2.bf16.msra.mxu0 0
      %538 = vmatprep.subr.bf16.mxu0 0
      %539 = vmatpush2.bf16.msra.mxu0 0
      %540 = vmatprep.subr.bf16.mxu0 0
      %541 = vmatpush2.bf16.msra.mxu0 0
      %542 = vmatprep.subr.bf16.mxu0 0
      %543 = vmatpush2.bf16.msra.mxu0 0
      %544 = vmatprep.subr.bf16.mxu0 0
      %545 = vmatpush2.bf16.msra.mxu0 0
      %546 = vmatprep.subr.bf16.mxu0 0
      %547 = vmatpush2.bf16.msra.mxu0 0
      %548 = vmatprep.mubr.bf16.mxu0 0
      %549 = vmatmul.mubr.bf16.gmra.mxu0 %v464
      %v550 = vpop.f32.mrf.mxu0
      %v551 = vadd.f32 0.0, %v550
      %v552 = vpop.f32.mrf.mxu0
      %v553 = vpop.f32.mrf.mxu0
      %v554 = vadd.f32 0.0, %v553
      %v555 = vpop.f32.mrf.mxu0
      %556 = vmatprep.mubr.bf16.mxu0 0
      %557 = vmatmul.mubr.bf16.gmra.mxu0 %v465
      %v558 = vpop.f32.mrf.mxu0
      %v559 = vadd.f32 0.0, %v558
      %v560 = vpop.f32.mrf.mxu0
      %v561 = vpop.f32.mrf.mxu0
      %v562 = vadd.f32 0.0, %v561
      %v563 = vpop.f32.mrf.mxu0
      %564 = vdwg.mxu0
      %v565 = vpack.c.bf16 %v554, %v551
      %v566 = vpack.c.bf16 %v562, %v559
      %v569 = vunpack.c.l.b16 %v565
      %v570 = vunpack.c.h.b16 %v565
      %v571 = vunpack.c.l.b16 %v566
      %v572 = vunpack.c.h.b16 %v566
      %v573 = vpack.c.b16 %v569, %v569
      %v574 = vpack.c.b16 %v570, %v570
      %v575 = vpack.c.b16 %v571, %v571
      %v576 = vpack.c.b16 %v572, %v572
      %vm581 = vcmask 257024
      %582 = vst.msk [vmem:[%s405] sm:$0xf] %vm581, %v573
      %583 = vst.msk [vmem:[%s405 + $0x4] sm:$0xf] %vm581, %v574
      %584 = vst.msk [vmem:[%s405 + $0x8] sm:$0xf] %vm581, %v575
      %585 = vst.msk [vmem:[%s405 + $0xc] sm:$0xf] %vm581, %v576
      %v586 = vld [vmem:[%s387] sm:$0xf]
      %v587 = vld [vmem:[%s387 + $0x4] sm:$0xf]
      %v588 = vld [vmem:[%s387 + $0x8] sm:$0xf]
      %v589 = vld [vmem:[%s387 + $0xc] sm:$0xf]
      %v590 = vld [vmem:[%s387 + $0x10] sm:$0xf]
      %v591 = vld [vmem:[%s387 + $0x14] sm:$0xf]
      %v592 = vld [vmem:[%s387 + $0x18] sm:$0xf]
      %v593 = vld [vmem:[%s387 + $0x1c] sm:$0xf]
      %v594 = vld [vmem:[%s387 + $0x20] sm:$0xf]
      %v595 = vld [vmem:[%s387 + $0x24] sm:$0xf]
      %v596 = vld [vmem:[%s387 + $0x28] sm:$0xf]
      %v597 = vld [vmem:[%s387 + $0x2c] sm:$0xf]
      %v598 = vld [vmem:[%s387 + $0x30] sm:$0xf]
      %v599 = vld [vmem:[%s387 + $0x34] sm:$0xf]
      %v600 = vld [vmem:[%s387 + $0x38] sm:$0xf]
      %v601 = vld [vmem:[%s387 + $0x3c] sm:$0xf]
      %v618 = vunpack.c.l.b16 %v586
      %v619 = vunpack.c.l.b16 %v587
      %v620 = vunpack.c.l.b16 %v588
      %v621 = vunpack.c.l.b16 %v589
      %v622 = vunpack.c.l.b16 %v590
      %v623 = vunpack.c.l.b16 %v591
      %v624 = vunpack.c.l.b16 %v592
      %v625 = vunpack.c.l.b16 %v593
      %v626 = vunpack.c.l.b16 %v594
      %v627 = vunpack.c.l.b16 %v595
      %v628 = vunpack.c.l.b16 %v596
      %v629 = vunpack.c.l.b16 %v597
      %v630 = vunpack.c.l.b16 %v598
      %v631 = vunpack.c.l.b16 %v599
      %v632 = vunpack.c.l.b16 %v600
      %v633 = vunpack.c.l.b16 %v601
      %v634 = vpack.c.b16 %v619, %v618
      %v635 = vpack.c.b16 %v621, %v620
      %v636 = vpack.c.b16 %v623, %v622
      %v637 = vpack.c.b16 %v625, %v624
      %v638 = vpack.c.b16 %v627, %v626
      %v639 = vpack.c.b16 %v629, %v628
      %v640 = vpack.c.b16 %v631, %v630
      %v641 = vpack.c.b16 %v633, %v632
      %650 = vmatprep.subr.bf16.mxu0 0
      %651 = vmatpush1.bf16.msra.mxu0 %v641
      %652 = vmatprep.subr.bf16.mxu0 0
      %653 = vmatpush1.bf16.msra.mxu0 %v640
      %654 = vmatprep.subr.bf16.mxu0 0
      %655 = vmatpush1.bf16.msra.mxu0 %v639
      %656 = vmatprep.subr.bf16.mxu0 0
      %657 = vmatpush1.bf16.msra.mxu0 %v638
      %658 = vmatprep.subr.bf16.mxu0 0
      %659 = vmatpush1.bf16.msra.mxu0 %v637
      %660 = vmatprep.subr.bf16.mxu0 0
      %661 = vmatpush1.bf16.msra.mxu0 %v636
      %662 = vmatprep.subr.bf16.mxu0 0
      %663 = vmatpush1.bf16.msra.mxu0 %v635
      %664 = vmatprep.subr.bf16.mxu0 0
      %665 = vmatpush1.bf16.msra.mxu0 %v634
      %666 = vmatprep.subr.bf16.mxu0 0
      %667 = vmatpush2.bf16.msra.mxu0 0
      %668 = vmatprep.subr.bf16.mxu0 0
      %669 = vmatpush2.bf16.msra.mxu0 0
      %670 = vmatprep.subr.bf16.mxu0 0
      %671 = vmatpush2.bf16.msra.mxu0 0
      %672 = vmatprep.subr.bf16.mxu0 0
      %673 = vmatpush2.bf16.msra.mxu0 0
      %674 = vmatprep.subr.bf16.mxu0 0
      %675 = vmatpush2.bf16.msra.mxu0 0
      %676 = vmatprep.subr.bf16.mxu0 0
      %677 = vmatpush2.bf16.msra.mxu0 0
      %678 = vmatprep.subr.bf16.mxu0 0
      %679 = vmatpush2.bf16.msra.mxu0 0
      %680 = vmatprep.subr.bf16.mxu0 0
      %681 = vmatpush2.bf16.msra.mxu0 0
      %682 = vmatprep.mubr.bf16.mxu0 0
      %683 = vmatmul.mubr.bf16.gmra.mxu0 %v464
      %v684 = vpop.f32.mrf.mxu0
      %v685 = vadd.f32 0.0, %v684
      %v686 = vpop.f32.mrf.mxu0
      %v687 = vpop.f32.mrf.mxu0
      %v688 = vadd.f32 0.0, %v687
      %v689 = vpop.f32.mrf.mxu0
      %690 = vmatprep.mubr.bf16.mxu0 0
      %691 = vmatmul.mubr.bf16.gmra.mxu0 %v465
      %v692 = vpop.f32.mrf.mxu0
      %v693 = vadd.f32 0.0, %v692
      %v694 = vpop.f32.mrf.mxu0
      %v695 = vpop.f32.mrf.mxu0
      %v696 = vadd.f32 0.0, %v695
      %v697 = vpop.f32.mrf.mxu0
      %698 = vdwg.mxu0
      %v699 = vpack.c.bf16 %v688, %v685
      %v700 = vpack.c.bf16 %v696, %v693
      %v703 = vunpack.c.l.b16 %v699
      %v704 = vunpack.c.h.b16 %v699
      %v705 = vunpack.c.l.b16 %v700
      %v706 = vunpack.c.h.b16 %v700
      %v707 = vpack.c.b16 %v703, %v703
      %v708 = vpack.c.b16 %v704, %v704
      %v709 = vpack.c.b16 %v705, %v705
      %v710 = vpack.c.b16 %v706, %v706
      %715 = vst.msk [vmem:[%s419] sm:$0xf] %vm581, %v707
      %716 = vst.msk [vmem:[%s419 + $0x4] sm:$0xf] %vm581, %v708
      %717 = vst.msk [vmem:[%s419 + $0x8] sm:$0xf] %vm581, %v709
      %718 = vst.msk [vmem:[%s419 + $0xc] sm:$0xf] %vm581, %v710
      %v719 = vld [vmem:[%s392] sm:$0xf]
      %v720 = vld [vmem:[%s392 + $0x4] sm:$0xf]
      %v721 = vld [vmem:[%s392 + $0x8] sm:$0xf]
      %v722 = vld [vmem:[%s392 + $0xc] sm:$0xf]
      %v723 = vld [vmem:[%s392 + $0x10] sm:$0xf]
      %v724 = vld [vmem:[%s392 + $0x14] sm:$0xf]
      %v725 = vld [vmem:[%s392 + $0x18] sm:$0xf]
      %v726 = vld [vmem:[%s392 + $0x1c] sm:$0xf]
      %v727 = vld [vmem:[%s392 + $0x20] sm:$0xf]
      %v728 = vld [vmem:[%s392 + $0x24] sm:$0xf]
      %v729 = vld [vmem:[%s392 + $0x28] sm:$0xf]
      %v730 = vld [vmem:[%s392 + $0x2c] sm:$0xf]
      %v731 = vld [vmem:[%s392 + $0x30] sm:$0xf]
      %v732 = vld [vmem:[%s392 + $0x34] sm:$0xf]
      %v733 = vld [vmem:[%s392 + $0x38] sm:$0xf]
      %v734 = vld [vmem:[%s392 + $0x3c] sm:$0xf]
      %v751 = vunpack.c.l.b16 %v719
      %v752 = vunpack.c.l.b16 %v720
      %v753 = vunpack.c.l.b16 %v721
      %v754 = vunpack.c.l.b16 %v722
      %v755 = vunpack.c.l.b16 %v723
      %v756 = vunpack.c.l.b16 %v724
      %v757 = vunpack.c.l.b16 %v725
      %v758 = vunpack.c.l.b16 %v726
      %v759 = vunpack.c.l.b16 %v727
      %v760 = vunpack.c.l.b16 %v728
      %v761 = vunpack.c.l.b16 %v729
      %v762 = vunpack.c.l.b16 %v730
      %v763 = vunpack.c.l.b16 %v731
      %v764 = vunpack.c.l.b16 %v732
      %v765 = vunpack.c.l.b16 %v733
      %v766 = vunpack.c.l.b16 %v734
      %v767 = vpack.c.b16 %v752, %v751
      %v768 = vpack.c.b16 %v754, %v753
      %v769 = vpack.c.b16 %v756, %v755
      %v770 = vpack.c.b16 %v758, %v757
      %v771 = vpack.c.b16 %v760, %v759
      %v772 = vpack.c.b16 %v762, %v761
      %v773 = vpack.c.b16 %v764, %v763
      %v774 = vpack.c.b16 %v766, %v765
      %783 = vmatprep.subr.bf16.mxu0 0
      %784 = vmatpush1.bf16.msra.mxu0 %v774
      %785 = vmatprep.subr.bf16.mxu0 0
      %786 = vmatpush1.bf16.msra.mxu0 %v773
      %787 = vmatprep.subr.bf16.mxu0 0
      %788 = vmatpush1.bf16.msra.mxu0 %v772
      %789 = vmatprep.subr.bf16.mxu0 0
      %790 = vmatpush1.bf16.msra.mxu0 %v771
      %791 = vmatprep.subr.bf16.mxu0 0
      %792 = vmatpush1.bf16.msra.mxu0 %v770
      %793 = vmatprep.subr.bf16.mxu0 0
      %794 = vmatpush1.bf16.msra.mxu0 %v769
      %795 = vmatprep.subr.bf16.mxu0 0
      %796 = vmatpush1.bf16.msra.mxu0 %v768
      %797 = vmatprep.subr.bf16.mxu0 0
      %798 = vmatpush1.bf16.msra.mxu0 %v767
      %799 = vmatprep.subr.bf16.mxu0 0
      %800 = vmatpush2.bf16.msra.mxu0 0
      %801 = vmatprep.subr.bf16.mxu0 0
      %802 = vmatpush2.bf16.msra.mxu0 0
      %803 = vmatprep.subr.bf16.mxu0 0
      %804 = vmatpush2.bf16.msra.mxu0 0
      %805 = vmatprep.subr.bf16.mxu0 0
      %806 = vmatpush2.bf16.msra.mxu0 0
      %807 = vmatprep.subr.bf16.mxu0 0
      %808 = vmatpush2.bf16.msra.mxu0 0
      %809 = vmatprep.subr.bf16.mxu0 0
      %810 = vmatpush2.bf16.msra.mxu0 0
      %811 = vmatprep.subr.bf16.mxu0 0
      %812 = vmatpush2.bf16.msra.mxu0 0
      %813 = vmatprep.subr.bf16.mxu0 0
      %814 = vmatpush2.bf16.msra.mxu0 0
      %815 = vmatprep.mubr.bf16.mxu0 0
      %816 = vmatmul.mubr.bf16.gmra.mxu0 %v464
      %v817 = vpop.f32.mrf.mxu0
      %v818 = vadd.f32 0.0, %v817
      %v819 = vpop.f32.mrf.mxu0
      %v820 = vpop.f32.mrf.mxu0
      %v821 = vadd.f32 0.0, %v820
      %v822 = vpop.f32.mrf.mxu0
      %823 = vmatprep.mubr.bf16.mxu0 0
      %824 = vmatmul.mubr.bf16.gmra.mxu0 %v465
      %v825 = vpop.f32.mrf.mxu0
      %v826 = vadd.f32 0.0, %v825
      %v827 = vpop.f32.mrf.mxu0
      %v828 = vpop.f32.mrf.mxu0
      %v829 = vadd.f32 0.0, %v828
      %v830 = vpop.f32.mrf.mxu0
      %831 = vdwg.mxu0
      %v832 = vpack.c.bf16 %v821, %v818
      %v833 = vpack.c.bf16 %v829, %v826
      %v836 = vunpack.c.l.b16 %v832
      %v837 = vunpack.c.h.b16 %v832
      %v838 = vunpack.c.l.b16 %v833
      %v839 = vunpack.c.h.b16 %v833
      %v840 = vpack.c.b16 %v836, %v836
      %v841 = vpack.c.b16 %v837, %v837
      %v842 = vpack.c.b16 %v838, %v838
      %v843 = vpack.c.b16 %v839, %v839
      %848 = vst.msk [vmem:[%s433] sm:$0xf] %vm581, %v840
      %849 = vst.msk [vmem:[%s433 + $0x4] sm:$0xf] %vm581, %v841
      %850 = vst.msk [vmem:[%s433 + $0x8] sm:$0xf] %vm581, %v842
      %851 = vst.msk [vmem:[%s433 + $0xc] sm:$0xf] %vm581, %v843
      %s852 = smul.u32 4, %s24
      %p853 = scmp.lt.s32.totalorder %s23, 1
      %s854 = scalar_select %p853, %s23, 1
      %p855 = scmp.lt.s32.totalorder %s25, 3
      %s856 = scalar_select %p855, %s25, 3
      %p857 = scmp.lt.s32.totalorder %s852, 7
      %s858 = scalar_select %p857, %s852, 7
      %s859 = smul.addr %s856, 8
      %s860 = sadd.s32 %s858, %s859
      %s861 = smul.addr %s854, 32
      %s862 = sadd.s32 %s860, %s861
      %s863 = smul.addr %s862, 4
      %s864 = scalar_lea.vmem %s4, %s863
      %s865 = smul.u32 4, %s24
      %p866 = scmp.lt.s32.totalorder %s23, 1
      %s867 = scalar_select %p866, %s23, 1
      %p868 = scmp.lt.s32.totalorder %s25, 3
      %s869 = scalar_select %p868, %s25, 3
      %p870 = scmp.lt.s32.totalorder %s865, 7
      %s871 = scalar_select %p870, %s865, 7
      %s872 = smul.addr %s869, 8
      %s873 = sadd.s32 %s871, %s872
      %s874 = smul.addr %s867, 32
      %s875 = sadd.s32 %s873, %s874
      %s876 = smul.addr %s875, 4
      %s877 = scalar_lea.vmem %s5, %s876
      %s878 = smul.u32 4, %s24
      %p879 = scmp.lt.s32.totalorder %s23, 1
      %s880 = scalar_select %p879, %s23, 1
      %p881 = scmp.lt.s32.totalorder %s25, 3
      %s882 = scalar_select %p881, %s25, 3
      %p883 = scmp.lt.s32.totalorder %s878, 7
      %s884 = scalar_select %p883, %s878, 7
      %s885 = smul.addr %s882, 8
      %s886 = sadd.s32 %s884, %s885
      %s887 = smul.addr %s880, 32
      %s888 = sadd.s32 %s886, %s887
      %s889 = smul.addr %s888, 4
      %s890 = scalar_lea.vmem %s6, %s889
      // Predicated region
      $region37: #{tpu_custom_call.1} parent=35 // pred_check
        %p891 = pneg %p165
      $region38: #{tpu_custom_call.1} parent=35 // pred_check_branch
        %893 = sbr.rel (%p891) target = $region40
      $region39: #{tpu_custom_call.1} parent=35 // pred_region
        %s894 = smul.u32 4, %s24
      $region40: #{tpu_custom_call.1} parent=35 // pred_fallthru
        _
      // Predicated region
      $region41: #{tpu_custom_call.1} parent=35 // pred_check
        %p895 = pneg %p195
      $region42: #{tpu_custom_call.1} parent=35 // pred_check_branch
        %897 = sbr.rel (%p895) target = $region44
      $region43: #{tpu_custom_call.1} parent=35 // pred_region
        %s898 = smul.u32 4, %s24
      $region44: #{tpu_custom_call.1} parent=35 // pred_fallthru
        _
      // Predicated region
      $region45: #{tpu_custom_call.1} parent=35 // pred_check
        %p899 = pneg %p225
      $region46: #{tpu_custom_call.1} parent=35 // pred_check_branch
        %901 = sbr.rel (%p899) target = $region48
      $region47: #{tpu_custom_call.1} parent=35 // pred_region
        %s902 = smul.u32 4, %s24
      $region48: #{tpu_custom_call.1} parent=35 // pred_fallthru
        _
    $region36: #{tpu_custom_call.1} parent=5 // pred_fallthru
      _
    %p903 = scmp.le.s32.totalorder 2, %s13
    // Predicated region
    $region49: #{tpu_custom_call.1} parent=5 // pred_check
      %p904 = pneg %p903
    $region50: #{tpu_custom_call.1} parent=5 // pred_check_branch
      %906 = sbr.rel (%p904) target = $region52
    $region51: #{tpu_custom_call.1} parent=5 // pred_region
      %s907 = ssub.s32 %s13, 2
      // Predicated region
      $region53: #{tpu_custom_call.1} parent=51 // pred_check
        %p908 = pneg %p171
      $region54: #{tpu_custom_call.1} parent=51 // pred_check_branch
        %910 = sbr.rel (%p908) target = $region56
      $region55: #{tpu_custom_call.1} parent=51 // pred_region
        %s911 = smul.u32 4, %s27
        %p912 = scmp.lt.s32.totalorder %s26, 1
        %s913 = scalar_select %p912, %s26, 1
        %p914 = scmp.lt.s32.totalorder %s28, 3
        %s915 = scalar_select %p914, %s28, 3
        %p916 = scmp.lt.s32.totalorder %s911, 7
        %s917 = scalar_select %p916, %s911, 7
        %s918 = smul.addr %s915, 8
        %s919 = sadd.s32 %s917, %s918
        %s920 = smul.addr %s913, 32
        %s921 = sadd.s32 %s919, %s920
        %s922 = smul.addr %s921, 4
        %s923 = scalar_lea.vmem %s4, %s922
      $region56: #{tpu_custom_call.1} parent=51 // pred_fallthru
        _
      // Predicated region
      $region57: #{tpu_custom_call.1} parent=51 // pred_check
        %p924 = pneg %p201
      $region58: #{tpu_custom_call.1} parent=51 // pred_check_branch
        %926 = sbr.rel (%p924) target = $region60
      $region59: #{tpu_custom_call.1} parent=51 // pred_region
        %s927 = smul.u32 4, %s27
        %p928 = scmp.lt.s32.totalorder %s26, 1
        %s929 = scalar_select %p928, %s26, 1
        %p930 = scmp.lt.s32.totalorder %s28, 3
        %s931 = scalar_select %p930, %s28, 3
        %p932 = scmp.lt.s32.totalorder %s927, 7
        %s933 = scalar_select %p932, %s927, 7
        %s934 = smul.addr %s931, 8
        %s935 = sadd.s32 %s933, %s934
        %s936 = smul.addr %s929, 32
        %s937 = sadd.s32 %s935, %s936
        %s938 = smul.addr %s937, 4
        %s939 = scalar_lea.vmem %s5, %s938
      $region60: #{tpu_custom_call.1} parent=51 // pred_fallthru
        _
      // Predicated region
      $region61: #{tpu_custom_call.1} parent=51 // pred_check
        %p940 = pneg %p231
      $region62: #{tpu_custom_call.1} parent=51 // pred_check_branch
        %942 = sbr.rel (%p940) target = $region64
      $region63: #{tpu_custom_call.1} parent=51 // pred_region
        %s943 = smul.u32 4, %s27
        %p944 = scmp.lt.s32.totalorder %s26, 1
        %s945 = scalar_select %p944, %s26, 1
        %p946 = scmp.lt.s32.totalorder %s28, 3
        %s947 = scalar_select %p946, %s28, 3
        %p948 = scmp.lt.s32.totalorder %s943, 7
        %s949 = scalar_select %p948, %s943, 7
        %s950 = smul.addr %s947, 8
        %s951 = sadd.s32 %s949, %s950
        %s952 = smul.addr %s945, 32
        %s953 = sadd.s32 %s951, %s952
        %s954 = smul.addr %s953, 4
        %s955 = scalar_lea.vmem %s6, %s954
      $region64: #{tpu_custom_call.1} parent=51 // pred_fallthru
        _
    $region52: #{tpu_custom_call.1} parent=5 // pred_fallthru
      _
  $region6: #{tpu_custom_call.1} parent=0 // loop_footer
    %s17 = sadd.s32 1, %s13
  $region7: #{tpu_custom_call.1} parent=0 // loop_footer_branch
    %12 = sbr.rel target = $region3
  $region8: #{tpu_custom_call.1} parent=0 // loop_exit
    _

</llo_original>
